<compile_context>
chip_gen: v7x
topology: tpu7x:2x2x1
jax: 0.10.0
libtpu: 0.0.40
codegen_flags: <defaults>
</compile_context>

<pallas_src>
from functools import partial

import numpy as np

import jax
import jax.numpy as jnp
from jax.experimental import pallas as pl
from jax.experimental.pallas import tpu as pltpu


def _textcnn_kernel(k_max, lout_pad, emb_ref, w_ref, b_ref, mask_ref, out_ref):
    """One grid step: TILE_B batch rows -> pooled relu features (TILE_B, n_out_pad).

    emb_ref : (TILE_B, L_pad, E)         bf16  embedded tokens (time zero-padded on host)
    w_ref   : (k_max*E, n_out_pad)       bf16  fused, zero-padded conv weights
    b_ref   : (1, n_out_pad)             f32   fused conv bias (0 in padded columns)
    mask_ref: (lout_pad, n_out_pad)      f32   additive mask (0 valid, -1e30 invalid)
    out_ref : (TILE_B, n_out_pad)        f32   relu(max-pool(conv)) features
    """
    x = emb_ref[...]                                      # (TB, L_pad, E) bf16
    tb, _, e = x.shape

    # im2col: lane-concatenate k_max shifted views -> (TB, lout_pad, k_max*E).
    cols = jnp.concatenate(
        [x[:, j:j + lout_pad, :] for j in range(k_max)], axis=-1)
    cols2 = cols.reshape(tb * lout_pad, k_max * e)        # M = TB*lout_pad

    # Single fused MXU matmul for all kernel sizes, f32 accumulation.
    acc = jnp.dot(cols2, w_ref[...], preferred_element_type=jnp.float32)
    acc = acc.reshape(tb, lout_pad, -1) + mask_ref[...][None]   # mask invalid t

    # Global max over time, then bias + relu (bias commutes with max per column).
    pooled = jnp.max(acc, axis=1) + b_ref[...]            # (TB, n_out_pad)
    out_ref[...] = jnp.maximum(pooled, 0.0)


def textcnn_negsamp_forward(inputs, neg_class, params, ks, tile_b=8):
    """inputs: (B, L) int32 token ids; neg_class: (B, n_samp) int32 class ids."""
    emb_table = params["embedding"]          # (V, E)
    class_emb = params["class_embedding"]    # (C, 3*Nf)
    conv_ws = params["conv_w"]               # list of (Nf, E, k)  (PyTorch layout)
    conv_bs = params["conv_b"]               # list of (Nf,)

    B, L = inputs.shape
    E = emb_table.shape[1]
    Nf = conv_ws[0].shape[0]
    k_max = max(ks)
    n_out = len(ks) * Nf
    n_out_pad = -(-n_out // 128) * 128                    # lane-dense output width
    lout_max = L - min(ks) + 1
    # Round pooled time extent up to a multiple of 16 (bf16 sublane tile) so the
    # im2col reshape stays tile-aligned; extra rows are masked in-kernel.
    lout_pad = -(-lout_max // 16) * 16
    # Host-padded time extent so every shifted view of length lout_pad is valid.
    l_pad = -(-(lout_pad + k_max - 1) // 8) * 8

    # Embedding gather stays in XLA glue; bf16 to halve HBM traffic.
    embedded = jnp.take(emb_table.astype(jnp.bfloat16), inputs, axis=0)  # (B, L, E)

    # Host-side weight fusion: zero-pad each kernel size to k_max taps, stack
    # along N, zero-pad N to a multiple of 128 lanes. bf16 for the MXU.
    w_blocks = []
    for w, k in zip(conv_ws, ks):
        wt = jnp.transpose(w, (2, 1, 0)).reshape(k * E, Nf)   # (k*E, Nf)
        wt = jnp.pad(wt, ((0, (k_max - k) * E), (0, 0)))      # -> (k_max*E, Nf)
        w_blocks.append(wt)
    w_fused = jnp.concatenate(w_blocks, axis=1)               # (k_max*E, n_out)
    w_fused = jnp.pad(w_fused, ((0, 0), (0, n_out_pad - n_out))).astype(jnp.bfloat16)
    b_fused = jnp.pad(jnp.concatenate(conv_bs), (0, n_out_pad - n_out))
    b_fused = b_fused.reshape(1, n_out_pad).astype(jnp.float32)

    # Additive time-validity mask (0 valid, -1e30 invalid), built host-side.
    mask_np = np.full((lout_pad, n_out_pad), -1e30, np.float32)
    for i, k in enumerate(ks):
        mask_np[: L - k + 1, i * Nf:(i + 1) * Nf] = 0.0
    mask = jnp.asarray(mask_np)

    # Batch tiling (pad B up to a multiple of tile_b) + host-side time padding.
    tile_b = min(tile_b, B)
    b_pad = -(-B // tile_b) * tile_b
    embedded = jnp.pad(embedded, ((0, b_pad - B), (0, l_pad - L), (0, 0)))

    feats = pl.pallas_call(
        partial(_textcnn_kernel, k_max, lout_pad),
        out_shape=jax.ShapeDtypeStruct((b_pad, n_out_pad), jnp.float32),
        grid=(b_pad // tile_b,),
        in_specs=[
            pl.BlockSpec((tile_b, l_pad, E), lambda b: (b, 0, 0)),
            pl.BlockSpec((k_max * E, n_out_pad), lambda b: (0, 0)),
            pl.BlockSpec((1, n_out_pad), lambda b: (0, 0)),
            pl.BlockSpec((lout_pad, n_out_pad), lambda b: (0, 0)),
        ],
        out_specs=pl.BlockSpec((tile_b, n_out_pad), lambda b: (b, 0)),
        compiler_params=pltpu.CompilerParams(
            dimension_semantics=("parallel",),      # shard batch tiles on v7x's 2 TCs
            vmem_limit_bytes=32 * 1024 * 1024,      # tiny tiles, well under v7x 64 MiB
        ),
    )(embedded, w_fused, b_fused, mask)
    feats = feats[:B, :n_out]                        # drop batch + lane padding

    # TODO(synk): training-mode dropout not implemented (eval-mode identity).

    # Negative-sample logits: tiny contraction, done in XLA on the whole batch.
    ce = jnp.take(class_emb, neg_class, axis=0)      # (B, n_samp, n_out)
    return jnp.einsum("bnd,bd->bn", ce, feats)       # (B, n_samp)


def ref_forward(inputs, neg_class, params, ks):
    """Pure-JAX reference replicating the PyTorch forward (eval mode)."""
    embedded = jnp.take(params["embedding"], inputs, axis=0)   # (B, L, E)
    B, L, _ = embedded.shape
    feats = []
    for w, bvec, k in zip(params["conv_w"], params["conv_b"], ks):
        lout = L - k + 1
        acc = jnp.zeros((B, lout, w.shape[0]), jnp.float32) + bvec
        for j in range(k):
            acc = acc + jnp.einsum("ble,fe->blf", embedded[:, j:j + lout, :], w[:, :, j])
        feats.append(jnp.maximum(jnp.max(acc, axis=1), 0.0))   # relu(max(conv))
    x_cat = jnp.concatenate(feats, axis=1)                     # (B, 3*Nf)
    ce = jnp.take(params["class_embedding"], neg_class, axis=0)
    return jnp.einsum("bnd,bd->bn", ce, x_cat)


def make_params(key, V, E, Nf, ks, C):
    keys = jax.random.split(key, 2 + 2 * len(ks))
    emb = jax.random.normal(keys[0], (V, E), jnp.float32)
    emb = emb.at[0].set(0.0)   # padding_idx=0
    class_emb = jax.random.normal(keys[1], (C, 3 * Nf), jnp.float32)
    conv_w, conv_b = [], []
    for i, k in enumerate(ks):
        conv_w.append(0.1 * jax.random.normal(keys[2 + 2 * i], (Nf, E, k), jnp.float32))
        conv_b.append(0.1 * jax.random.normal(keys[3 + 2 * i], (Nf,), jnp.float32))
    return {"embedding": emb, "class_embedding": class_emb,
            "conv_w": conv_w, "conv_b": conv_b}


if __name__ == "__main__":
    # Small config: vocab=50, embed=32, num_filters=16, kernel_sizes=(2,3,4),
    # num_classes=6, batch=16 (tiled by 8), seq_len=16, n_negative_samples=3.
    V, E, Nf, C = 50, 32, 16, 6
    Ks = (2, 3, 4)
    B, L, n_samp = 16, 16, 3

    key = jax.random.PRNGKey(0)
    kp, ki, kn = jax.random.split(key, 3)
    params = make_params(kp, V, E, Nf, Ks, C)
    inputs = jax.random.randint(ki, (B, L), 0, V, dtype=jnp.int32)
    neg_class = jax.random.randint(kn, (B, n_samp), 0, C, dtype=jnp.int32)

    logits = textcnn_negsamp_forward(inputs, neg_class, params, Ks, tile_b=8)
    logits = jax.block_until_ready(logits)
    assert logits.shape == (B, n_samp)

    # Tight check: reference fed the same bf16-rounded embedding/conv weights
    # (isolates kernel math from bf16 input quantization).
    params_q = dict(params)
    params_q["embedding"] = params["embedding"].astype(jnp.bfloat16).astype(jnp.float32)
    params_q["conv_w"] = [w.astype(jnp.bfloat16).astype(jnp.float32)
                          for w in params["conv_w"]]
    ref_q = jax.block_until_ready(ref_forward(inputs, neg_class, params_q, Ks))
    assert jnp.allclose(logits, ref_q, rtol=1e-3, atol=1e-3), (logits, ref_q)

    # Loose check vs the full-f32 PyTorch-equivalent reference (gap = bf16
    # quantization of the MXU operands).
    ref = jax.block_until_ready(ref_forward(inputs, neg_class, params, Ks))
    assert jnp.allclose(logits, ref, rtol=5e-2, atol=2.5e-1), (logits, ref)

    print("KERNEL_OK")
</pallas_src>

<mosaic_0001>
module attributes {stable_mosaic.version = 11 : i64} {
  func.func @_textcnn_kernel(%arg0: i32, %arg1: memref<8x24x32xbf16, #tpu.memory_space<vmem>>, %arg2: memref<128x128xbf16, #tpu.memory_space<vmem>>, %arg3: memref<1x128xf32, #tpu.memory_space<vmem>>, %arg4: memref<16x128xf32, #tpu.memory_space<vmem>>, %arg5: memref<8x128xf32, #tpu.memory_space<vmem>>) attributes {dimension_semantics = [#tpu.dimension_semantics<parallel>], iteration_bounds = array<i64: 2>, scalar_prefetch = 0 : i64, scratch_operands = 0 : i64, tpu.core_type = #tpu.core_type<tc>, window_params = [{transform_indices = @transform_0, window_bounds = array<i64: 8, 24, 32>}, {pipeline_mode = #tpu.pipeline_mode<synchronous>, transform_indices = @transform_1, window_bounds = array<i64: 128, 128>}, {pipeline_mode = #tpu.pipeline_mode<synchronous>, transform_indices = @transform_2, window_bounds = array<i64: 1, 128>}, {pipeline_mode = #tpu.pipeline_mode<synchronous>, transform_indices = @transform_3, window_bounds = array<i64: 16, 128>}, {transform_indices = @transform_4, window_bounds = array<i64: 8, 128>}]} {
    %c0 = arith.constant 0 : index
    %c0_0 = arith.constant 0 : index
    %c0_1 = arith.constant 0 : index
    %0 = vector.load %arg1[%c0, %c0_0, %c0_1] : memref<8x24x32xbf16, #tpu.memory_space<vmem>>, vector<8x24x32xbf16>
    %1 = vector.extract_strided_slice %0 {offsets = [0, 0, 0], sizes = [8, 16, 32], strides = [1, 1, 1]} : vector<8x24x32xbf16> to vector<8x16x32xbf16>
    %2 = vector.extract_strided_slice %0 {offsets = [0, 1, 0], sizes = [8, 16, 32], strides = [1, 1, 1]} : vector<8x24x32xbf16> to vector<8x16x32xbf16>
    %3 = vector.extract_strided_slice %0 {offsets = [0, 2, 0], sizes = [8, 16, 32], strides = [1, 1, 1]} : vector<8x24x32xbf16> to vector<8x16x32xbf16>
    %4 = vector.extract_strided_slice %0 {offsets = [0, 3, 0], sizes = [8, 16, 32], strides = [1, 1, 1]} : vector<8x24x32xbf16> to vector<8x16x32xbf16>
    %5 = tpu.concatenate %1, %2, %3, %4 in 2 : vector<8x16x32xbf16>, vector<8x16x32xbf16>, vector<8x16x32xbf16>, vector<8x16x32xbf16> -> vector<8x16x128xbf16>
    %6 = vector.shape_cast %5 : vector<8x16x128xbf16> to vector<128x128xbf16>
    %c0_2 = arith.constant 0 : index
    %c0_3 = arith.constant 0 : index
    %7 = vector.load %arg2[%c0_2, %c0_3] : memref<128x128xbf16, #tpu.memory_space<vmem>>, vector<128x128xbf16>
    %cst = arith.constant dense<0.000000e+00> : vector<128x128xf32>
    %8 = tpu.matmul %6, %7, %cst {dimension_numbers = #tpu.dot_dimension_numbers<[1], [0], [0], [1], [0, 0, 1, 1], [], []>} : vector<128x128xbf16>, vector<128x128xbf16>, vector<128x128xf32> -> vector<128x128xf32>
    %9 = vector.shape_cast %8 : vector<128x128xf32> to vector<8x16x128xf32>
    %c0_4 = arith.constant 0 : index
    %c0_5 = arith.constant 0 : index
    %10 = vector.load %arg4[%c0_4, %c0_5] : memref<16x128xf32, #tpu.memory_space<vmem>>, vector<16x128xf32>
    %11 = vector.shape_cast %10 : vector<16x128xf32> to vector<1x16x128xf32>
    %12 = vector.broadcast %11 : vector<1x16x128xf32> to vector<8x16x128xf32>
    %13 = arith.addf %9, %12 : vector<8x16x128xf32>
    %cst_6 = arith.constant dense<0xFF800000> : vector<8x128xf32>
    %14 = vector.multi_reduction <maximumf>, %13, %cst_6 [1] : vector<8x16x128xf32> to vector<8x128xf32>
    %c0_7 = arith.constant 0 : index
    %c0_8 = arith.constant 0 : index
    %15 = vector.load %arg3[%c0_7, %c0_8] : memref<1x128xf32, #tpu.memory_space<vmem>>, vector<1x128xf32>
    %16 = vector.broadcast %15 : vector<1x128xf32> to vector<8x128xf32>
    %17 = arith.addf %14, %16 : vector<8x128xf32>
    %cst_9 = arith.constant 0.000000e+00 : f32
    %18 = vector.broadcast %cst_9 : f32 to vector<8x128xf32>
    %19 = arith.maximumf %17, %18 : vector<8x128xf32>
    %c0_10 = arith.constant 0 : index
    %c0_11 = arith.constant 0 : index
    %20 = vector.load %arg5[%c0_10, %c0_11] : memref<8x128xf32, #tpu.memory_space<vmem>>, vector<8x128xf32>
    tpu.vector_store %arg5[%c0_10, %c0_11], %19 {strides = array<i32>} : memref<8x128xf32, #tpu.memory_space<vmem>>, vector<8x128xf32>,
    return
  }
  func.func @transform_0(%arg0: i32) -> (i32, i32, i32) {
    %c0_i32 = arith.constant 0 : i32
    %c0_i32_0 = arith.constant 0 : i32
    %c0_i32_1 = arith.constant 0 : i32
    return %arg0, %c0_i32, %c0_i32_0 : i32, i32, i32
  }
  func.func @transform_1(%arg0: i32) -> (i32, i32) {
    %c0_i32 = arith.constant 0 : i32
    %c0_i32_0 = arith.constant 0 : i32
    %c0_i32_1 = arith.constant 0 : i32
    return %c0_i32, %c0_i32_0 : i32, i32
  }
  func.func @transform_2(%arg0: i32) -> (i32, i32) {
    %c0_i32 = arith.constant 0 : i32
    %c0_i32_0 = arith.constant 0 : i32
    %c0_i32_1 = arith.constant 0 : i32
    return %c0_i32, %c0_i32_0 : i32, i32
  }
  func.func @transform_3(%arg0: i32) -> (i32, i32) {
    %c0_i32 = arith.constant 0 : i32
    %c0_i32_0 = arith.constant 0 : i32
    %c0_i32_1 = arith.constant 0 : i32
    return %c0_i32, %c0_i32_0 : i32, i32
  }
  func.func @transform_4(%arg0: i32) -> (i32, i32) {
    %c0_i32 = arith.constant 0 : i32
    %c0_i32_0 = arith.constant 0 : i32
    return %arg0, %c0_i32 : i32, i32
  }
}

</mosaic_0001>

<llo_original>
// kernel: tpu_custom_call.1
$region0: #{tpu_custom_call.1}
  #allocation0 [shape = 'u32[]', space=smem, size = 0x4, offset = 0x4, fixed_abs, tag = 'smem constant byte address 0x4 - core index']
  #allocation1 [shape = 'u32[144,128]{1,0:T(1,128)}', space=vmem, size = 0x12000, scoped, tag = 'internal scratch']
  %s0 = inlined_call_operand.hbm [shape: bf16[16,24,32], index: 0, kind: input, shape index: {}]
  %s1 = inlined_call_operand.hbm [shape: bf16[128,128], index: 1, kind: input, shape index: {}]
  %s2 = inlined_call_operand.vmem [shape: f32[1,128], index: 2, kind: input, shape index: {}]
  %s3 = inlined_call_operand.hbm [shape: f32[16,128], index: 3, kind: input, shape index: {}]
  %s4 = inlined_call_operand.hbm [shape: f32[16,128], index: 4, kind: output, shape index: {}]
  %s5 = sld [smem:[#allocation0]]
  $region61: #{tpu_custom_call.1} parent=0
    _
  %s7 = ssub.s32 1, %s5
  %s8 = scalar_select 0, %s7, %s5
  $region1: #{tpu_custom_call.1} parent=0
    #allocation2 [shape = 'u8[98304]{0}', space=vmem, size = 0x18000, scoped, tag = 'input window, operand 0']
    #allocation3 [shape = 's32[2]{0}', space=sflag, size = 0x8, scoped, tag = 'scoped memory for tpu_custom_call.1']
    #allocation4 [shape = 's32[2]{0}', space=sflag, size = 0x8, scoped, tag = 'scoped memory for tpu_custom_call.1']
    #allocation5 [shape = 'u8[32768]{0}', space=vmem, size = 0x8000, scoped, tag = 'input window, operand 1, single buffered']
    #allocation6 [shape = 's32[1]{0}', space=sflag, size = 0x4, scoped, tag = 'scoped memory for tpu_custom_call.1']
    #allocation7 [shape = 'u8[8192]{0}', space=vmem, size = 0x2000, scoped, tag = 'input window, operand 3, single buffered']
    #allocation8 [shape = 'u8[8192]{0}', space=vmem, size = 0x2000, scoped, tag = 'output window, operand 0']
    %9 = vsyncpa [#allocation3], 0
    %s10 = scalar_lea.sflag [#allocation3], 1
    %11 = vsyncpa %s10, 0
    %12 = vsyncpa [#allocation6], 0
    %13 = vsyncpa [#allocation4], 0
    %s14 = scalar_lea.sflag [#allocation4], 1
    %15 = vsyncpa %s14, 0
    loop: start=0, step=1, limit=4
    $region2: #{tpu_custom_call.1} parent=1 // loop_pre_header
      _
    $region3: #{tpu_custom_call.1} parent=1 // loop_header
      %s17 = sphi 0, %s21
      %p18 = scmp.ge.s32.totalorder %s17, 4
      %s27 = sphi 0, %s29
      %s30 = sphi 0, %s27
      %s31 = sphi 0, %s30
      %s47 = sphi 0, %s31
      %s51 = sphi 0, %s51
      %s53 = sphi 0, %s51
      %s54 = sphi 0, %s53
      %s68 = sphi 0, %s54
      %s72 = sphi 0, %s72
      %s74 = sphi 0, %s72
      %s75 = sphi 0, %s74
      %s89 = sphi 0, %s75
      %s93 = sphi 0, %s93
      %s95 = sphi 0, %s93
      %s96 = sphi 0, %s95
      %s110 = sphi 0, %s96
      %s116 = sphi 0, %s118
      %s119 = sphi 0, %s116
      %s120 = sphi 0, %s119
      %s136 = sphi 0, %s120
    $region4: #{tpu_custom_call.1} parent=1 // loop_header_branch
      %20 = sbr.rel (%p18) target = $region8
    $region5: #{tpu_custom_call.1} parent=1 // loop_body
      %s22 = ssub.s32 %s17, 1
      %s23 = ssub.s32 %s17, 2
      %s24 = sadd.s32 %s17, 1
      %s25 = ssub.s32 %s17, %s24
      %p26 = scmp.eq.s32.totalorder %s25, 0
      %s28 = sadd.s32 %s27, 1
      %s29 = scalar_select %p26, %s27, %s28
      %p32 = pneg %p26
      %p33 = scmp.eq.s32.totalorder %s17, 1
      %p34 = por %p32, %p33
      %p35 = scmp.ne.s32.totalorder %s27, %s30
      %p36 = scmp.eq.s32.totalorder %s17, 0
      %p37 = por %p35, %p36
      %p38 = scmp.ne.s32.totalorder %s27, %s30
      %p39 = scmp.eq.s32.totalorder %s22, 1
      %p40 = por %p38, %p39
      %p41 = scmp.ne.s32.totalorder %s30, %s31
      %p42 = scmp.eq.s32.totalorder %s22, 0
      %p43 = por %p41, %p42
      %p44 = scmp.ne.s32.totalorder %s30, %s31
      %p45 = scmp.eq.s32.totalorder %s23, 1
      %p46 = por %p44, %p45
      %p48 = scmp.ne.s32.totalorder %s31, %s47
      %p49 = scmp.eq.s32.totalorder %s23, 0
      %p50 = por %p48, %p49
      %s52 = sadd.s32 %s51, 1
      %p55 = scmp.eq.s32.totalorder %s17, 1
      %p56 = scmp.ne.s32.totalorder %s51, %s53
      %p57 = scmp.eq.s32.totalorder %s17, 0
      %p58 = por %p56, %p57
      %p59 = scmp.ne.s32.totalorder %s51, %s53
      %p60 = scmp.eq.s32.totalorder %s22, 1
      %p61 = por %p59, %p60
      %p62 = scmp.ne.s32.totalorder %s53, %s54
      %p63 = scmp.eq.s32.totalorder %s22, 0
      %p64 = por %p62, %p63
      %p65 = scmp.ne.s32.totalorder %s53, %s54
      %p66 = scmp.eq.s32.totalorder %s23, 1
      %p67 = por %p65, %p66
      %p69 = scmp.ne.s32.totalorder %s54, %s68
      %p70 = scmp.eq.s32.totalorder %s23, 0
      %p71 = por %p69, %p70
      %s73 = sadd.s32 %s72, 1
      %p76 = scmp.eq.s32.totalorder %s17, 1
      %p77 = scmp.ne.s32.totalorder %s72, %s74
      %p78 = scmp.eq.s32.totalorder %s17, 0
      %p79 = por %p77, %p78
      %p80 = scmp.ne.s32.totalorder %s72, %s74
      %p81 = scmp.eq.s32.totalorder %s22, 1
      %p82 = por %p80, %p81
      %p83 = scmp.ne.s32.totalorder %s74, %s75
      %p84 = scmp.eq.s32.totalorder %s22, 0
      %p85 = por %p83, %p84
      %p86 = scmp.ne.s32.totalorder %s74, %s75
      %p87 = scmp.eq.s32.totalorder %s23, 1
      %p88 = por %p86, %p87
      %p90 = scmp.ne.s32.totalorder %s75, %s89
      %p91 = scmp.eq.s32.totalorder %s23, 0
      %p92 = por %p90, %p91
      %s94 = sadd.s32 %s93, 1
      %p97 = scmp.eq.s32.totalorder %s17, 1
      %p98 = scmp.ne.s32.totalorder %s93, %s95
      %p99 = scmp.eq.s32.totalorder %s17, 0
      %p100 = por %p98, %p99
      %p101 = scmp.ne.s32.totalorder %s93, %s95
      %p102 = scmp.eq.s32.totalorder %s22, 1
      %p103 = por %p101, %p102
      %p104 = scmp.ne.s32.totalorder %s95, %s96
      %p105 = scmp.eq.s32.totalorder %s22, 0
      %p106 = por %p104, %p105
      %p107 = scmp.ne.s32.totalorder %s95, %s96
      %p108 = scmp.eq.s32.totalorder %s23, 1
      %p109 = por %p107, %p108
      %p111 = scmp.ne.s32.totalorder %s96, %s110
      %p112 = scmp.eq.s32.totalorder %s23, 0
      %p113 = por %p111, %p112
      %s114 = ssub.s32 %s17, %s24
      %p115 = scmp.eq.s32.totalorder %s114, 0
      %s117 = sadd.s32 %s116, 1
      %s118 = scalar_select %p115, %s116, %s117
      %p121 = pneg %p115
      %p122 = scmp.eq.s32.totalorder %s17, 1
      %p123 = por %p121, %p122
      %p124 = scmp.ne.s32.totalorder %s116, %s119
      %p125 = scmp.eq.s32.totalorder %s17, 0
      %p126 = por %p124, %p125
      %p127 = scmp.ne.s32.totalorder %s116, %s119
      %p128 = scmp.eq.s32.totalorder %s22, 1
      %p129 = por %p127, %p128
      %p130 = scmp.ne.s32.totalorder %s119, %s120
      %p131 = scmp.eq.s32.totalorder %s22, 0
      %p132 = por %p130, %p131
      %p133 = scmp.ne.s32.totalorder %s119, %s120
      %p134 = scmp.eq.s32.totalorder %s23, 1
      %p135 = por %p133, %p134
      %p137 = scmp.ne.s32.totalorder %s120, %s136
      %p138 = scmp.eq.s32.totalorder %s23, 0
      %p139 = por %p137, %p138
      %p140 = scmp.le.s32.totalorder 1, %s17
      %p141 = scmp.lt.s32.totalorder %s17, 3
      %p142 = pnand %p140, %p141
      %p143 = pneg %p142
      // Predicated region
      $region9: #{tpu_custom_call.1} parent=5 // pred_check
        _
      $region10: #{tpu_custom_call.1} parent=5 // pred_check_branch
        %145 = sbr.rel (%p142) target = $region12
      $region11: #{tpu_custom_call.1} parent=5 // pred_region
        %s146 = ssub.s32 %s17, 1
        // Predicated region
        $region13: #{tpu_custom_call.1} parent=11 // pred_check
          %p147 = pneg %p64
        $region14: #{tpu_custom_call.1} parent=11 // pred_check_branch
          %149 = sbr.rel (%p147) target = $region16
        $region15: #{tpu_custom_call.1} parent=11 // pred_region
          %s151 = ssub.s32 1024, 1024
          %152 = vsyncadd [#allocation6], %s151
          %s153 = sshll.u32 [#allocation5], 4
          %s154 = int_to_ptr.vmem [resolvable:$true] %s153
          %159 = dma.hbm_to_vmem [thread:$0]  %s1, 1024, %s154, [#allocation6], 64, 64, 4
        $region16: #{tpu_custom_call.1} parent=11 // pred_fallthru
          _
        // Predicated region
        $region17: #{tpu_custom_call.1} parent=11 // pred_check
          %p160 = pneg %p85
        $region18: #{tpu_custom_call.1} parent=11 // pred_check_branch
          %162 = sbr.rel (%p160) target = $region20
        $region19: #{tpu_custom_call.1} parent=11 // pred_region
          _
        $region20: #{tpu_custom_call.1} parent=11 // pred_fallthru
          _
        // Predicated region
        $region21: #{tpu_custom_call.1} parent=11 // pred_check
          %p163 = pneg %p106
        $region22: #{tpu_custom_call.1} parent=11 // pred_check_branch
          %165 = sbr.rel (%p163) target = $region24
        $region23: #{tpu_custom_call.1} parent=11 // pred_region
          %s167 = ssub.s32 256, 256
          %168 = vsyncadd [#allocation6], %s167
          %s169 = sshll.u32 [#allocation7], 4
          %s170 = int_to_ptr.vmem [resolvable:$true] %s169
          %175 = dma.hbm_to_vmem [thread:$0]  %s3, 256, %s170, [#allocation6], 128, 128, 8
        $region24: #{tpu_custom_call.1} parent=11 // pred_fallthru
          _
      $region12: #{tpu_custom_call.1} parent=5 // pred_fallthru
        _
      %p176 = scmp.lt.s32.totalorder %s17, 2
      // Predicated region
      $region25: #{tpu_custom_call.1} parent=5 // pred_check
        %p177 = pneg %p176
      $region26: #{tpu_custom_call.1} parent=5 // pred_check_branch
        %179 = sbr.rel (%p177) target = $region28
      $region27: #{tpu_custom_call.1} parent=5 // pred_region
        // Predicated region
        $region29: #{tpu_custom_call.1} parent=27 // pred_check
          %p180 = pneg %p37
        $region30: #{tpu_custom_call.1} parent=27 // pred_check_branch
          %182 = sbr.rel (%p180) target = $region32
        $region31: #{tpu_custom_call.1} parent=27 // pred_region
          %s183 = sand.u32 %s27, 1
          %s184 = scalar_lea.sflag [#allocation3], %s183
          %s185 = sand.u32 %s27, 1
          %s186 = smul.addr %s185, 96
          %s187 = scalar_lea.vmem [#allocation2], %s186
          %s188 = smul.u32 8, %s17
          %s190 = ssub.s32 1536, 1536
          %191 = vsyncadd %s184, %s190
          %s192 = smul.addr %s188, 3
          %s193 = smul.addr %s192, 64
          %s194 = scalar_lea.hbm %s0, %s193
          %s195 = sshll.u32 %s187, 4
          %s196 = int_to_ptr.vmem [resolvable:$true] %s195
          %201 = dma.hbm_to_vmem [thread:$0]  %s194, 1536, %s196, %s184, 64, 64, 4
        $region32: #{tpu_custom_call.1} parent=27 // pred_fallthru
          _
      $region28: #{tpu_custom_call.1} parent=5 // pred_fallthru
        _
      %p202 = scmp.le.s32.totalorder 1, %s17
      %p203 = scmp.lt.s32.totalorder %s17, 3
      %p204 = pnand %p202, %p203
      %p205 = pneg %p204
      // Predicated region
      $region33: #{tpu_custom_call.1} parent=5 // pred_check
        _
      $region34: #{tpu_custom_call.1} parent=5 // pred_check_branch
        %207 = sbr.rel (%p204) target = $region36
      $region35: #{tpu_custom_call.1} parent=5 // pred_region
        %s208 = ssub.s32 %s17, 1
        %s209 = sand.u32 %s30, 1
        %s210 = scalar_lea.sflag [#allocation3], %s209
        %s211 = sand.u32 %s30, 1
        %s212 = smul.addr %s211, 96
        %s213 = scalar_lea.vmem [#allocation2], %s212
        // Predicated region
        $region37: #{tpu_custom_call.1} parent=35 // pred_check
          %p214 = pneg %p43
        $region38: #{tpu_custom_call.1} parent=35 // pred_check_branch
          %216 = sbr.rel (%p214) target = $region40
        $region39: #{tpu_custom_call.1} parent=35 // pred_region
          %217 = dma.done %s210, 1536
        $region40: #{tpu_custom_call.1} parent=35 // pred_fallthru
          _
        // Predicated region
        $region41: #{tpu_custom_call.1} parent=35 // pred_check
          %p218 = pneg %p64
        $region42: #{tpu_custom_call.1} parent=35 // pred_check_branch
          %220 = sbr.rel (%p218) target = $region44
        $region43: #{tpu_custom_call.1} parent=35 // pred_region
          %221 = dma.done [#allocation6], 1024
        $region44: #{tpu_custom_call.1} parent=35 // pred_fallthru
          _
        // Predicated region
        $region45: #{tpu_custom_call.1} parent=35 // pred_check
          %p222 = pneg %p106
        $region46: #{tpu_custom_call.1} parent=35 // pred_check_branch
          %224 = sbr.rel (%p222) target = $region48
        $region47: #{tpu_custom_call.1} parent=35 // pred_region
          %225 = dma.done [#allocation6], 256
        $region48: #{tpu_custom_call.1} parent=35 // pred_fallthru
          _
        %s226 = sand.u32 %s30, 1
        %s227 = scalar_lea.sflag [#allocation3], %s226
        %s228 = sand.u32 %s30, 1
        %s229 = smul.addr %s228, 96
        %s230 = scalar_lea.vmem [#allocation2], %s229
        %p231 = pneg %p43
        %p232 = pneg %p40
        %p233 = pneg %p64
        %p234 = pneg %p61
        %p235 = pneg %p85
        %p236 = pneg %p82
        %p237 = pneg %p106
        %p238 = pneg %p103
        %p239 = pneg %p132
        %p240 = pneg %p129
        %s241 = sand.u32 %s119, 1
        %s242 = scalar_lea.sflag [#allocation4], %s241
        %s243 = sand.u32 %s119, 1
        %s244 = smul.addr %s243, 8
        %s245 = scalar_lea.vmem [#allocation8], %s244
        %s246 = smul.u32 8, %s22
        %v248 = vld [vmem:[%s213] sm:$0xf]
        %v249 = vld [vmem:[%s213 + $0x4] sm:$0xf]
        %v250 = vld [vmem:[%s213 + $0x8] sm:$0xf]
        %v251 = vld [vmem:[%s213 + $0xc] sm:$0xf]
        %v252 = vld [vmem:[%s213 + $0x10] sm:$0xf]
        %v253 = vld [vmem:[%s213 + $0x14] sm:$0xf]
        %v254 = vld [vmem:[%s213 + $0x18] sm:$0xf]
        %v255 = vld [vmem:[%s213 + $0x1c] sm:$0xf]
        %v256 = vld [vmem:[%s213 + $0x20] sm:$0xf]
        %v257 = vld [vmem:[%s213 + $0x24] sm:$0xf]
        %v258 = vld [vmem:[%s213 + $0x28] sm:$0xf]
        %v259 = vld [vmem:[%s213 + $0x2c] sm:$0xf]
        %v260 = vld [vmem:[%s213 + $0x30] sm:$0xf]
        %v261 = vld [vmem:[%s213 + $0x34] sm:$0xf]
        %v262 = vld [vmem:[%s213 + $0x38] sm:$0xf]
        %v263 = vld [vmem:[%s213 + $0x3c] sm:$0xf]
        %v264 = vld [vmem:[%s213 + $0x40] sm:$0xf]
        %v265 = vld [vmem:[%s213 + $0x44] sm:$0xf]
        %v266 = vld [vmem:[%s213 + $0x48] sm:$0xf]
        %v267 = vld [vmem:[%s213 + $0x4c] sm:$0xf]
        %v268 = vld [vmem:[%s213 + $0x50] sm:$0xf]
        %v269 = vld [vmem:[%s213 + $0x54] sm:$0xf]
        %v270 = vld [vmem:[%s213 + $0x58] sm:$0xf]
        %v271 = vld [vmem:[%s213 + $0x5c] sm:$0xf]
        %v288 = vunpack.c.l.b16 %v248
        %v289 = vunpack.c.l.b16 %v249
        %v290 = vunpack.c.l.b16 %v251
        %v291 = vunpack.c.l.b16 %v252
        %v292 = vunpack.c.l.b16 %v254
        %v293 = vunpack.c.l.b16 %v255
        %v294 = vunpack.c.l.b16 %v257
        %v295 = vunpack.c.l.b16 %v258
        %v296 = vunpack.c.l.b16 %v260
        %v297 = vunpack.c.l.b16 %v261
        %v298 = vunpack.c.l.b16 %v263
        %v299 = vunpack.c.l.b16 %v264
        %v300 = vunpack.c.l.b16 %v266
        %v301 = vunpack.c.l.b16 %v267
        %v302 = vunpack.c.l.b16 %v269
        %v303 = vunpack.c.l.b16 %v270
        %v304 = vpack.c.b16 %v289, %v288
        %v305 = vpack.c.b16 %v291, %v290
        %v306 = vpack.c.b16 %v293, %v292
        %v307 = vpack.c.b16 %v295, %v294
        %v308 = vpack.c.b16 %v297, %v296
        %v309 = vpack.c.b16 %v299, %v298
        %v310 = vpack.c.b16 %v301, %v300
        %v311 = vpack.c.b16 %v303, %v302
        %v320 = vunpack.c.l.b16 %v250
        %v321 = vunpack.c.l.b16 %v253
        %v322 = vunpack.c.l.b16 %v256
        %v323 = vunpack.c.l.b16 %v259
        %v324 = vunpack.c.l.b16 %v262
        %v325 = vunpack.c.l.b16 %v265
        %v326 = vunpack.c.l.b16 %v268
        %v327 = vunpack.c.l.b16 %v271
        %v328 = vpack.c.b16 %v320, %v320
        %v329 = vpack.c.b16 %v321, %v321
        %v330 = vpack.c.b16 %v322, %v322
        %v331 = vpack.c.b16 %v323, %v323
        %v332 = vpack.c.b16 %v324, %v324
        %v333 = vpack.c.b16 %v325, %v325
        %v334 = vpack.c.b16 %v326, %v326
        %v335 = vpack.c.b16 %v327, %v327
        %vm336 = vsmask.f32 7424
        %v338 = vshrl.u32 %v304, 16
        %v340 = vshll.u32 %v304, 16
        %v342 = vrot.slane %v340, 1
        %v343 = vor.u32 %v338, %v342
        %v345 = vshll.u32 %v328, 16
        %v347 = vrot.slane %v345, 1
        %v348 = vsel %vm336, %v343, %v347
        %v350 = vshrl.u32 %v305, 16
        %v352 = vshll.u32 %v305, 16
        %v354 = vrot.slane %v352, 1
        %v355 = vor.u32 %v350, %v354
        %v357 = vshll.u32 %v329, 16
        %v359 = vrot.slane %v357, 1
        %v360 = vsel %vm336, %v355, %v359
        %v362 = vshrl.u32 %v306, 16
        %v364 = vshll.u32 %v306, 16
        %v366 = vrot.slane %v364, 1
        %v367 = vor.u32 %v362, %v366
        %v369 = vshll.u32 %v330, 16
        %v371 = vrot.slane %v369, 1
        %v372 = vsel %vm336, %v367, %v371
        %v374 = vshrl.u32 %v307, 16
        %v376 = vshll.u32 %v307, 16
        %v378 = vrot.slane %v376, 1
        %v379 = vor.u32 %v374, %v378
        %v381 = vshll.u32 %v331, 16
        %v383 = vrot.slane %v381, 1
        %v384 = vsel %vm336, %v379, %v383
        %v386 = vshrl.u32 %v308, 16
        %v388 = vshll.u32 %v308, 16
        %v390 = vrot.slane %v388, 1
        %v391 = vor.u32 %v386, %v390
        %v393 = vshll.u32 %v332, 16
        %v395 = vrot.slane %v393, 1
        %v396 = vsel %vm336, %v391, %v395
        %v398 = vshrl.u32 %v309, 16
        %v400 = vshll.u32 %v309, 16
        %v402 = vrot.slane %v400, 1
        %v403 = vor.u32 %v398, %v402
        %v405 = vshll.u32 %v333, 16
        %v407 = vrot.slane %v405, 1
        %v408 = vsel %vm336, %v403, %v407
        %v410 = vshrl.u32 %v310, 16
        %v412 = vshll.u32 %v310, 16
        %v414 = vrot.slane %v412, 1
        %v415 = vor.u32 %v410, %v414
        %v417 = vshll.u32 %v334, 16
        %v419 = vrot.slane %v417, 1
        %v420 = vsel %vm336, %v415, %v419
        %v422 = vshrl.u32 %v311, 16
        %v424 = vshll.u32 %v311, 16
        %v426 = vrot.slane %v424, 1
        %v427 = vor.u32 %v422, %v426
        %v429 = vshll.u32 %v335, 16
        %v431 = vrot.slane %v429, 1
        %v432 = vsel %vm336, %v427, %v431
        %433 = vrot.lane.b32.xlu0 %v348, 32
        %v434 = vpop.permute.xlu0 %433
        %435 = vrot.lane.b32.xlu0 %v360, 32
        %v436 = vpop.permute.xlu0 %435
        %437 = vrot.lane.b32.xlu0 %v372, 32
        %v438 = vpop.permute.xlu0 %437
        %439 = vrot.lane.b32.xlu0 %v384, 32
        %v440 = vpop.permute.xlu0 %439
        %441 = vrot.lane.b32.xlu0 %v396, 32
        %v442 = vpop.permute.xlu0 %441
        %443 = vrot.lane.b32.xlu0 %v408, 32
        %v444 = vpop.permute.xlu0 %443
        %445 = vrot.lane.b32.xlu0 %v420, 32
        %v446 = vpop.permute.xlu0 %445
        %447 = vrot.lane.b32.xlu0 %v432, 32
        %v448 = vpop.permute.xlu0 %447
        %vm449 = vcmask 1046528
        %v450 = vrot.slane %v304, 1
        %v451 = vrot.slane %v328, 1
        %v452 = vsel %vm449, %v450, %v451
        %v453 = vrot.slane %v305, 1
        %v454 = vrot.slane %v329, 1
        %v455 = vsel %vm449, %v453, %v454
        %v456 = vrot.slane %v306, 1
        %v457 = vrot.slane %v330, 1
        %v458 = vsel %vm449, %v456, %v457
        %v459 = vrot.slane %v307, 1
        %v460 = vrot.slane %v331, 1
        %v461 = vsel %vm449, %v459, %v460
        %v462 = vrot.slane %v308, 1
        %v463 = vrot.slane %v332, 1
        %v464 = vsel %vm449, %v462, %v463
        %v465 = vrot.slane %v309, 1
        %v466 = vrot.slane %v333, 1
        %v467 = vsel %vm449, %v465, %v466
        %v468 = vrot.slane %v310, 1
        %v469 = vrot.slane %v334, 1
        %v470 = vsel %vm449, %v468, %v469
        %v471 = vrot.slane %v311, 1
        %v472 = vrot.slane %v335, 1
        %v473 = vsel %vm449, %v471, %v472
        %474 = vrot.lane.b32.xlu0 %v452, 64
        %v475 = vpop.permute.xlu0 %474
        %476 = vrot.lane.b32.xlu0 %v455, 64
        %v477 = vpop.permute.xlu0 %476
        %478 = vrot.lane.b32.xlu0 %v458, 64
        %v479 = vpop.permute.xlu0 %478
        %480 = vrot.lane.b32.xlu0 %v461, 64
        %v481 = vpop.permute.xlu0 %480
        %482 = vrot.lane.b32.xlu0 %v464, 64
        %v483 = vpop.permute.xlu0 %482
        %484 = vrot.lane.b32.xlu0 %v467, 64
        %v485 = vpop.permute.xlu0 %484
        %486 = vrot.lane.b32.xlu0 %v470, 64
        %v487 = vpop.permute.xlu0 %486
        %488 = vrot.lane.b32.xlu0 %v473, 64
        %v489 = vpop.permute.xlu0 %488
        %vm490 = vsmask.f32 6400
        %v491 = vrot.slane %v338, 1
        %v492 = vrot.slane %v340, 2
        %v493 = vor.u32 %v491, %v492
        %v494 = vshrl.u32 %v328, 16
        %v496 = vrot.slane %v494, 1
        %v497 = vrot.slane %v345, 2
        %v498 = vor.u32 %v496, %v497
        %v499 = vsel %vm490, %v493, %v498
        %v500 = vrot.slane %v350, 1
        %v501 = vrot.slane %v352, 2
        %v502 = vor.u32 %v500, %v501
        %v503 = vshrl.u32 %v329, 16
        %v505 = vrot.slane %v503, 1
        %v506 = vrot.slane %v357, 2
        %v507 = vor.u32 %v505, %v506
        %v508 = vsel %vm490, %v502, %v507
        %v509 = vrot.slane %v362, 1
        %v510 = vrot.slane %v364, 2
        %v511 = vor.u32 %v509, %v510
        %v512 = vshrl.u32 %v330, 16
        %v514 = vrot.slane %v512, 1
        %v515 = vrot.slane %v369, 2
        %v516 = vor.u32 %v514, %v515
        %v517 = vsel %vm490, %v511, %v516
        %v518 = vrot.slane %v374, 1
        %v519 = vrot.slane %v376, 2
        %v520 = vor.u32 %v518, %v519
        %v521 = vshrl.u32 %v331, 16
        %v523 = vrot.slane %v521, 1
        %v524 = vrot.slane %v381, 2
        %v525 = vor.u32 %v523, %v524
        %v526 = vsel %vm490, %v520, %v525
        %v527 = vrot.slane %v386, 1
        %v528 = vrot.slane %v388, 2
        %v529 = vor.u32 %v527, %v528
        %v530 = vshrl.u32 %v332, 16
        %v532 = vrot.slane %v530, 1
        %v533 = vrot.slane %v393, 2
        %v534 = vor.u32 %v532, %v533
        %v535 = vsel %vm490, %v529, %v534
        %v536 = vrot.slane %v398, 1
        %v537 = vrot.slane %v400, 2
        %v538 = vor.u32 %v536, %v537
        %v539 = vshrl.u32 %v333, 16
        %v541 = vrot.slane %v539, 1
        %v542 = vrot.slane %v405, 2
        %v543 = vor.u32 %v541, %v542
        %v544 = vsel %vm490, %v538, %v543
        %v545 = vrot.slane %v410, 1
        %v546 = vrot.slane %v412, 2
        %v547 = vor.u32 %v545, %v546
        %v548 = vshrl.u32 %v334, 16
        %v550 = vrot.slane %v548, 1
        %v551 = vrot.slane %v417, 2
        %v552 = vor.u32 %v550, %v551
        %v553 = vsel %vm490, %v547, %v552
        %v554 = vrot.slane %v422, 1
        %v555 = vrot.slane %v424, 2
        %v556 = vor.u32 %v554, %v555
        %v557 = vshrl.u32 %v335, 16
        %v559 = vrot.slane %v557, 1
        %v560 = vrot.slane %v429, 2
        %v561 = vor.u32 %v559, %v560
        %v562 = vsel %vm490, %v556, %v561
        %563 = vrot.lane.b32.xlu0 %v499, 96
        %v564 = vpop.permute.xlu0 %563
        %565 = vrot.lane.b32.xlu0 %v508, 96
        %v566 = vpop.permute.xlu0 %565
        %567 = vrot.lane.b32.xlu0 %v517, 96
        %v568 = vpop.permute.xlu0 %567
        %569 = vrot.lane.b32.xlu0 %v526, 96
        %v570 = vpop.permute.xlu0 %569
        %571 = vrot.lane.b32.xlu0 %v535, 96
        %v572 = vpop.permute.xlu0 %571
        %573 = vrot.lane.b32.xlu0 %v544, 96
        %v574 = vpop.permute.xlu0 %573
        %575 = vrot.lane.b32.xlu0 %v553, 96
        %v576 = vpop.permute.xlu0 %575
        %577 = vrot.lane.b32.xlu0 %v562, 96
        %v578 = vpop.permute.xlu0 %577
        %vm579 = vcmask 261120
        %v581 = vsel %vm579, %v304, %v434
        %v583 = vsel %vm579, %v305, %v436
        %v585 = vsel %vm579, %v306, %v438
        %v587 = vsel %vm579, %v307, %v440
        %v589 = vsel %vm579, %v308, %v442
        %v591 = vsel %vm579, %v309, %v444
        %v593 = vsel %vm579, %v310, %v446
        %v595 = vsel %vm579, %v311, %v448
        %vm596 = vcmask 523264
        %v598 = vsel %vm596, %v581, %v475
        %v600 = vsel %vm596, %v583, %v477
        %v602 = vsel %vm596, %v585, %v479
        %v604 = vsel %vm596, %v587, %v481
        %v606 = vsel %vm596, %v589, %v483
        %v608 = vsel %vm596, %v591, %v485
        %v610 = vsel %vm596, %v593, %v487
        %v612 = vsel %vm596, %v595, %v489
        %vm613 = vcmask 785408
        %v615 = vsel %vm613, %v598, %v564
        %v618 = vsel %vm613, %v600, %v566
        %v621 = vsel %vm613, %v602, %v568
        %v624 = vsel %vm613, %v604, %v570
        %v627 = vsel %vm613, %v606, %v572
        %v630 = vsel %vm613, %v608, %v574
        %v633 = vsel %vm613, %v610, %v576
        %v636 = vsel %vm613, %v612, %v578
        %v638 = vld [vmem:[#allocation5] sm:$0xf]
        %v639 = vld [vmem:[#allocation5 + $0x4] sm:$0xf]
        %v640 = vld [vmem:[#allocation5 + $0x8] sm:$0xf]
        %v641 = vld [vmem:[#allocation5 + $0xc] sm:$0xf]
        %v642 = vld [vmem:[#allocation5 + $0x10] sm:$0xf]
        %v643 = vld [vmem:[#allocation5 + $0x14] sm:$0xf]
        %v644 = vld [vmem:[#allocation5 + $0x18] sm:$0xf]
        %v645 = vld [vmem:[#allocation5 + $0x1c] sm:$0xf]
        %v646 = vld [vmem:[#allocation5 + $0x20] sm:$0xf]
        %v647 = vld [vmem:[#allocation5 + $0x24] sm:$0xf]
        %v648 = vld [vmem:[#allocation5 + $0x28] sm:$0xf]
        %v649 = vld [vmem:[#allocation5 + $0x2c] sm:$0xf]
        %v650 = vld [vmem:[#allocation5 + $0x30] sm:$0xf]
        %v651 = vld [vmem:[#allocation5 + $0x34] sm:$0xf]
        %v652 = vld [vmem:[#allocation5 + $0x38] sm:$0xf]
        %v653 = vld [vmem:[#allocation5 + $0x3c] sm:$0xf]
        %v670 = vunpack.c.l.b16 %v638
        %v671 = vunpack.c.l.b16 %v639
        %v672 = vunpack.c.l.b16 %v640
        %v673 = vunpack.c.l.b16 %v641
        %v674 = vunpack.c.l.b16 %v642
        %v675 = vunpack.c.l.b16 %v643
        %v676 = vunpack.c.l.b16 %v644
        %v677 = vunpack.c.l.b16 %v645
        %v678 = vunpack.c.l.b16 %v646
        %v679 = vunpack.c.l.b16 %v647
        %v680 = vunpack.c.l.b16 %v648
        %v681 = vunpack.c.l.b16 %v649
        %v682 = vunpack.c.l.b16 %v650
        %v683 = vunpack.c.l.b16 %v651
        %v684 = vunpack.c.l.b16 %v652
        %v685 = vunpack.c.l.b16 %v653
        %v686 = vpack.c.b16 %v671, %v670
        %v687 = vpack.c.b16 %v673, %v672
        %v688 = vpack.c.b16 %v675, %v674
        %v689 = vpack.c.b16 %v677, %v676
        %v690 = vpack.c.b16 %v679, %v678
        %v691 = vpack.c.b16 %v681, %v680
        %v692 = vpack.c.b16 %v683, %v682
        %v693 = vpack.c.b16 %v685, %v684
        %702 = vmatprep.subr.bf16.mxu0 0
        %703 = vmatpush1.bf16.msra.mxu0 %v686
        %704 = vmatprep.subr.bf16.mxu0 0
        %705 = vmatpush1.bf16.msra.mxu0 %v687
        %706 = vmatprep.subr.bf16.mxu0 0
        %707 = vmatpush1.bf16.msra.mxu0 %v688
        %708 = vmatprep.subr.bf16.mxu0 0
        %709 = vmatpush1.bf16.msra.mxu0 %v689
        %710 = vmatprep.subr.bf16.mxu0 0
        %711 = vmatpush1.bf16.msra.mxu0 %v690
        %712 = vmatprep.subr.bf16.mxu0 0
        %713 = vmatpush1.bf16.msra.mxu0 %v691
        %714 = vmatprep.subr.bf16.mxu0 0
        %715 = vmatpush1.bf16.msra.mxu0 %v692
        %716 = vmatprep.subr.bf16.mxu0 0
        %717 = vmatpush1.bf16.msra.mxu0 %v693
        %718 = vmatprep.subr.bf16.mxu0 0
        %719 = vmatpush1.bf16.msra.mxu0 0
        %720 = vmatprep.subr.bf16.mxu0 0
        %721 = vmatpush1.bf16.msra.mxu0 0
        %722 = vmatprep.subr.bf16.mxu0 0
        %723 = vmatpush1.bf16.msra.mxu0 0
        %724 = vmatprep.subr.bf16.mxu0 0
        %725 = vmatpush1.bf16.msra.mxu0 0
        %726 = vmatprep.subr.bf16.mxu0 0
        %727 = vmatpush1.bf16.msra.mxu0 0
        %728 = vmatprep.subr.bf16.mxu0 0
        %729 = vmatpush1.bf16.msra.mxu0 0
        %730 = vmatprep.subr.bf16.mxu0 0
        %731 = vmatpush1.bf16.msra.mxu0 0
        %732 = vmatprep.subr.bf16.mxu0 0
        %733 = vmatpush1.bf16.msra.mxu0 0
        %734 = vmatprep.mubr.bf16.mxu0 0
        %735 = vmatmul.mubr.bf16.gmra.mrb[0].mxu0 %v615
        %v736 = vpop.f32.mrb[0].mxu0
        %v737 = vadd.f32 0.0, %v736
        %v738 = vpop.f32.mrb[0].mxu0
        %v739 = vpop.f32.mrb[0].mxu0
        %v740 = vadd.f32 0.0, %v739
        %v741 = vpop.f32.mrb[0].mxu0
        %742 = vmatprep.mubr.bf16.mxu0 0
        %743 = vmatmul.mubr.bf16.gmra.mrb[0].mxu0 %v618
        %v744 = vpop.f32.mrb[0].mxu0
        %v745 = vadd.f32 0.0, %v744
        %v746 = vpop.f32.mrb[0].mxu0
        %v747 = vpop.f32.mrb[0].mxu0
        %v748 = vadd.f32 0.0, %v747
        %v749 = vpop.f32.mrb[0].mxu0
        %750 = vmatprep.mubr.bf16.mxu0 0
        %751 = vmatmul.mubr.bf16.gmra.mrb[0].mxu0 %v621
        %v752 = vpop.f32.mrb[0].mxu0
        %v753 = vadd.f32 0.0, %v752
        %v754 = vpop.f32.mrb[0].mxu0
        %v755 = vpop.f32.mrb[0].mxu0
        %v756 = vadd.f32 0.0, %v755
        %v757 = vpop.f32.mrb[0].mxu0
        %758 = vmatprep.mubr.bf16.mxu0 0
        %759 = vmatmul.mubr.bf16.gmra.mrb[0].mxu0 %v624
        %v760 = vpop.f32.mrb[0].mxu0
        %v761 = vadd.f32 0.0, %v760
        %v762 = vpop.f32.mrb[0].mxu0
        %v763 = vpop.f32.mrb[0].mxu0
        %v764 = vadd.f32 0.0, %v763
        %v765 = vpop.f32.mrb[0].mxu0
        %766 = vmatprep.mubr.bf16.mxu0 0
        %767 = vmatmul.mubr.bf16.gmra.mrb[0].mxu0 %v627
        %v768 = vpop.f32.mrb[0].mxu0
        %v769 = vadd.f32 0.0, %v768
        %v770 = vpop.f32.mrb[0].mxu0
        %v771 = vpop.f32.mrb[0].mxu0
        %v772 = vadd.f32 0.0, %v771
        %v773 = vpop.f32.mrb[0].mxu0
        %774 = vmatprep.mubr.bf16.mxu0 0
        %775 = vmatmul.mubr.bf16.gmra.mrb[0].mxu0 %v630
        %v776 = vpop.f32.mrb[0].mxu0
        %v777 = vadd.f32 0.0, %v776
        %v778 = vpop.f32.mrb[0].mxu0
        %v779 = vpop.f32.mrb[0].mxu0
        %v780 = vadd.f32 0.0, %v779
        %v781 = vpop.f32.mrb[0].mxu0
        %782 = vmatprep.mubr.bf16.mxu0 0
        %783 = vmatmul.mubr.bf16.gmra.mrb[0].mxu0 %v633
        %v784 = vpop.f32.mrb[0].mxu0
        %v785 = vadd.f32 0.0, %v784
        %v786 = vpop.f32.mrb[0].mxu0
        %v787 = vpop.f32.mrb[0].mxu0
        %v788 = vadd.f32 0.0, %v787
        %v789 = vpop.f32.mrb[0].mxu0
        %790 = vmatprep.mubr.bf16.mxu0 0
        %791 = vmatmul.mubr.bf16.gmra.mrb[0].mxu0 %v636
        %v792 = vpop.f32.mrb[0].mxu0
        %v793 = vadd.f32 0.0, %v792
        %v794 = vpop.f32.mrb[0].mxu0
        %v795 = vpop.f32.mrb[0].mxu0
        %v796 = vadd.f32 0.0, %v795
        %v797 = vpop.f32.mrb[0].mxu0
        %798 = vdwg.mxu0
        %v799 = vld [vmem:[#allocation7] sm:$0xff]
        %v800 = vld [vmem:[#allocation7 + $0x8] sm:$0xff]
        %v801 = vadd.f32 %v737, %v799
        %v802 = vadd.f32 %v740, %v800
        %v803 = vadd.f32 %v745, %v799
        %v804 = vadd.f32 %v748, %v800
        %v805 = vadd.f32 %v753, %v799
        %v806 = vadd.f32 %v756, %v800
        %v807 = vadd.f32 %v761, %v799
        %v808 = vadd.f32 %v764, %v800
        %v809 = vadd.f32 %v769, %v799
        %v810 = vadd.f32 %v772, %v800
        %v811 = vadd.f32 %v777, %v799
        %v812 = vadd.f32 %v780, %v800
        %v813 = vadd.f32 %v785, %v799
        %v814 = vadd.f32 %v788, %v800
        %v815 = vadd.f32 %v793, %v799
        %v816 = vadd.f32 %v796, %v800
        %v817 = vmax.f32 %v801, %v802
        %v818 = vrot.slane %v817, 4
        %v819 = vmax.f32 %v817, %v818
        %v820 = vrot.slane %v819, 2
        %v821 = vmax.f32 %v819, %v820
        %v822 = vrot.slane %v821, 1
        %v823 = vmax.f32 %v821, %v822
        %v824 = vmax.f32 %v803, %v804
        %v825 = vrot.slane %v824, 4
        %v826 = vmax.f32 %v824, %v825
        %v827 = vrot.slane %v826, 2
        %v828 = vmax.f32 %v826, %v827
        %v829 = vrot.slane %v828, 1
        %v830 = vmax.f32 %v828, %v829
        %v831 = vmax.f32 %v805, %v806
        %v832 = vrot.slane %v831, 4
        %v833 = vmax.f32 %v831, %v832
        %v834 = vrot.slane %v833, 2
        %v835 = vmax.f32 %v833, %v834
        %v836 = vrot.slane %v835, 1
        %v837 = vmax.f32 %v835, %v836
        %v838 = vmax.f32 %v807, %v808
        %v839 = vrot.slane %v838, 4
        %v840 = vmax.f32 %v838, %v839
        %v841 = vrot.slane %v840, 2
        %v842 = vmax.f32 %v840, %v841
        %v843 = vrot.slane %v842, 1
        %v844 = vmax.f32 %v842, %v843
        %v845 = vmax.f32 %v809, %v810
        %v846 = vrot.slane %v845, 4
        %v847 = vmax.f32 %v845, %v846
        %v848 = vrot.slane %v847, 2
        %v849 = vmax.f32 %v847, %v848
        %v850 = vrot.slane %v849, 1
        %v851 = vmax.f32 %v849, %v850
        %v852 = vmax.f32 %v811, %v812
        %v853 = vrot.slane %v852, 4
        %v854 = vmax.f32 %v852, %v853
        %v855 = vrot.slane %v854, 2
        %v856 = vmax.f32 %v854, %v855
        %v857 = vrot.slane %v856, 1
        %v858 = vmax.f32 %v856, %v857
        %v859 = vmax.f32 %v813, %v814
        %v860 = vrot.slane %v859, 4
        %v861 = vmax.f32 %v859, %v860
        %v862 = vrot.slane %v861, 2
        %v863 = vmax.f32 %v861, %v862
        %v864 = vrot.slane %v863, 1
        %v865 = vmax.f32 %v863, %v864
        %v866 = vmax.f32 %v815, %v816
        %v867 = vrot.slane %v866, 4
        %v868 = vmax.f32 %v866, %v867
        %v869 = vrot.slane %v868, 2
        %v870 = vmax.f32 %v868, %v869
        %v871 = vrot.slane %v870, 1
        %v872 = vmax.f32 %v870, %v871
        %v873 = vld [vmem:[%s2] sm:$0x1]
        %v875 = vlaneseq
        %v876 = vshrl.u32 %v875, 7
        %v877 = vsub.s32 0, %v876
        %v878 = vrot.slane %v873, %v877
        %v880 = vadd.f32 %v823, %v878
        %v881 = vadd.f32 %v830, %v878
        %v882 = vadd.f32 %v837, %v878
        %v883 = vadd.f32 %v844, %v878
        %v884 = vadd.f32 %v851, %v878
        %v885 = vadd.f32 %v858, %v878
        %v886 = vadd.f32 %v865, %v878
        %v887 = vadd.f32 %v872, %v878
        %v888 = vmax.f32 %v880, 0.0
        %v889 = vmax.f32 %v881, 0.0
        %v890 = vmax.f32 %v882, 0.0
        %v891 = vmax.f32 %v883, 0.0
        %v892 = vmax.f32 %v884, 0.0
        %v893 = vmax.f32 %v885, 0.0
        %v894 = vmax.f32 %v886, 0.0
        %v895 = vmax.f32 %v887, 0.0
        %v904 = vrot.slane %v889, 7
        %vm905 = vcmask 1041409
        %v906 = vsel %vm905, %v904, %v888
        %v907 = vrot.slane %v890, 6
        %vm908 = vcmask 1042434
        %v909 = vsel %vm908, %v907, %v906
        %v910 = vrot.slane %v891, 5
        %vm911 = vcmask 1043459
        %v912 = vsel %vm911, %v910, %v909
        %v913 = vrot.slane %v892, 4
        %vm914 = vcmask 1044484
        %v915 = vsel %vm914, %v913, %v912
        %v916 = vrot.slane %v893, 3
        %vm917 = vcmask 1045509
        %v918 = vsel %vm917, %v916, %v915
        %v919 = vrot.slane %v894, 2
        %vm920 = vcmask 1046534
        %v921 = vsel %vm920, %v919, %v918
        %v922 = vrot.slane %v895, 1
        %vm923 = vcmask 1047559
        %v924 = vsel %vm923, %v922, %v921
        %926 = vst [vmem:[%s245] sm:$0xff] %v924
        %s927 = sand.u32 %s119, 1
        %s928 = scalar_lea.sflag [#allocation4], %s927
        %s929 = sand.u32 %s119, 1
        %s930 = smul.addr %s929, 8
        %s931 = scalar_lea.vmem [#allocation8], %s930
        // Predicated region
        $region49: #{tpu_custom_call.1} parent=35 // pred_check
          %p932 = pneg %p129
        $region50: #{tpu_custom_call.1} parent=35 // pred_check_branch
          %934 = sbr.rel (%p932) target = $region52
        $region51: #{tpu_custom_call.1} parent=35 // pred_region
          %s936 = ssub.s32 128, 128
          %937 = vsyncadd %s928, %s936
          %s938 = smul.addr %s22, 128
          %s939 = scalar_lea.hbm %s4, %s938
          %s941 = sshll.u32 %s931, 4
          %s942 = int_to_ptr.vmem [resolvable:$true] %s941
          %944 = dma.vmem_to_hbm [thread:$0]  %s942, 128, %s939, %s928
        $region52: #{tpu_custom_call.1} parent=35 // pred_fallthru
          _
      $region36: #{tpu_custom_call.1} parent=5 // pred_fallthru
        _
      %p945 = scmp.le.s32.totalorder 2, %s17
      // Predicated region
      $region53: #{tpu_custom_call.1} parent=5 // pred_check
        %p946 = pneg %p945
      $region54: #{tpu_custom_call.1} parent=5 // pred_check_branch
        %948 = sbr.rel (%p946) target = $region56
      $region55: #{tpu_custom_call.1} parent=5 // pred_region
        %s949 = ssub.s32 %s17, 2
        // Predicated region
        $region57: #{tpu_custom_call.1} parent=55 // pred_check
          %p950 = pneg %p135
        $region58: #{tpu_custom_call.1} parent=55 // pred_check_branch
          %952 = sbr.rel (%p950) target = $region60
        $region59: #{tpu_custom_call.1} parent=55 // pred_region
          %s953 = sand.u32 %s120, 1
          %s954 = scalar_lea.sflag [#allocation4], %s953
          %s955 = sand.u32 %s120, 1
          %s956 = smul.addr %s955, 8
          %s957 = scalar_lea.vmem [#allocation8], %s956
          %958 = dma.done %s954, 128
        $region60: #{tpu_custom_call.1} parent=55 // pred_fallthru
          _
      $region56: #{tpu_custom_call.1} parent=5 // pred_fallthru
        _
    $region6: #{tpu_custom_call.1} parent=1 // loop_footer
      %s21 = sadd.s32 1, %s17
    $region7: #{tpu_custom_call.1} parent=1 // loop_footer_branch
      %16 = sbr.rel target = $region3
    $region8: #{tpu_custom_call.1} parent=1 // loop_exit
      _
    %959 = vsyncpa [#allocation3], 1
    %s960 = scalar_lea.sflag [#allocation3], 1
    %961 = vsyncpa %s960, 1
    %962 = vsyncpa [#allocation6], 1
    %963 = vsyncpa [#allocation4], 1
    %s964 = scalar_lea.sflag [#allocation4], 1
    %965 = vsyncpa %s964, 1

</llo_original>
